<compile_context>
chip_gen: v7x
topology: tpu7x:2x2x1
jax: 0.10.0
libtpu: 0.0.40
codegen_flags: <defaults>
</compile_context>

<pallas_src>
import functools
from typing import NamedTuple

import jax
import jax.numpy as jnp
from jax.experimental import pallas as pl
from jax.experimental.pallas import tpu as pltpu


def _round_up(v: int, m: int) -> int:
    return (v + m - 1) // m * m


def _cdiv(a: int, b: int) -> int:
    return -(-a // b)


@functools.lru_cache(maxsize=1)
def _vmem_capacity_bytes() -> int:
    """Physical VMEM per TensorCore. Pure capability probe; the broad excepts only
    guard the hardware query (never kernel compilation) and fall back conservatively."""
    try:
        return int(pltpu.get_tpu_info().vmem_capacity_bytes)
    except Exception:
        pass
    try:
        kind = jax.devices()[0].device_kind.lower()
        return (64 << 20) if "v7" in kind else (128 << 20)   # v7x vs v5e/v6e
    except Exception:
        return 64 << 20                                        # most conservative


def _vmem_budget() -> int:
    # Leave ~25% of physical VMEM for compiler-internal scratch / pipelining.
    return (3 * _vmem_capacity_bytes()) // 4


def _tm_target() -> int:
    # Bigger row tiles amortize weight (re)streaming on 128-MiB parts (v5e/v6e);
    # keep 256 on 64-MiB v7x so double-buffered chunks + f32 accumulator still fit.
    return 512 if _vmem_capacity_bytes() >= (100 << 20) else 256


def _force_two_row_tiles() -> bool:
    # v7x (64 MiB VMEM/TC) has 2 TensorCores/chip sharded along the "parallel"
    # row axis: make sure short inputs still produce >= 2 row tiles.
    return _vmem_capacity_bytes() < (100 << 20)


def _vmem_estimate(tm, d_model_p, tk, item, out_item, chunked):
    est = 2 * tm * d_model_p * item            # x tile (double-buffered)
    est += 2 * tm * d_model_p * out_item       # out tile (double-buffered)
    est += 2 * d_model_p * tk * item           # W1 chunk
    est += 2 * tk * d_model_p * item           # W2 chunk
    est += 2 * max(tk, 128) * 4                # b1 chunk (f32)
    est += 2 * max(d_model_p, 128) * 4         # b2 (f32)
    est += tm * tk * 4                         # ReLU intermediate (f32)
    est += tm * d_model_p * 4                  # second matmul result (f32)
    if chunked:
        est += tm * d_model_p * 4              # resident f32 accumulator scratch
    return est


def _choose_dff_chunking(dff, d_model_p, tm, item, out_item, max_tk=None):
    """Balanced chunking of the dff reduction: the smallest kk whose VMEM footprint
    fits the generation-aware budget, tk = round_up(cdiv(dff, kk), 128)."""
    budget = _vmem_budget()
    cap = None if max_tk is None else max(128, _round_up(int(max_tk), 128))
    kk = 1
    while True:
        tk = _round_up(_cdiv(dff, kk), 128)
        if cap is not None and tk > cap:
            kk += 1
            continue
        est = _vmem_estimate(tm, d_model_p, tk, item, out_item, chunked=kk > 1)
        if est <= budget or tk == 128:
            return kk, tk, est
        kk += 1


def _pad_cast_2d(a, shape, dtype):
    """Zero-pad `a` into `shape` and cast to `dtype`; pass-through when already there."""
    dtype = jnp.dtype(dtype)
    if a.shape == tuple(shape):
        return a if a.dtype == dtype else a.astype(dtype)
    out = jnp.zeros(shape, dtype)
    return out.at[: a.shape[0], : a.shape[1]].set(a.astype(dtype))


class FFNParams(NamedTuple):
    w1: jax.Array          # (d_model_p, dff_p), compute_dtype
    b1: jax.Array          # (1, dff_p), f32
    w2: jax.Array          # (dff_p, d_model_p), compute_dtype
    b2: jax.Array          # (1, d_model_p), f32
    d_model: int
    dff: int
    d_model_p: int
    dff_p: int
    tk: int
    kk: int
    compute_dtype: jnp.dtype


def prepare_ffn_params(w1, b1, w2, b2, *, compute_dtype=jnp.bfloat16, max_tk=None):
    """Pad/cast the FFN weights once (do this outside the hot per-call path).
    Already lane-aligned weights in the compute dtype pass through with no copy."""
    compute_dtype = jnp.dtype(compute_dtype)
    d_model, dff = w1.shape
    assert w2.shape == (dff, d_model)
    assert b1.shape == (dff,) and b2.shape == (d_model,)
    d_model_p = _round_up(d_model, 128)
    kk, tk, _ = _choose_dff_chunking(dff, d_model_p, _tm_target(),
                                     compute_dtype.itemsize, 4, max_tk=max_tk)
    dff_p = kk * tk
    w1p = _pad_cast_2d(w1, (d_model_p, dff_p), compute_dtype)
    w2p = _pad_cast_2d(w2, (dff_p, d_model_p), compute_dtype)
    b1p = _pad_cast_2d(b1.reshape(1, -1), (1, dff_p), jnp.float32)
    b2p = _pad_cast_2d(b2.reshape(1, -1), (1, d_model_p), jnp.float32)
    return FFNParams(w1p, b1p, w2p, b2p, d_model, dff, d_model_p, dff_p, tk, kk,
                     compute_dtype)


# --------------------------- kernel bodies ---------------------------

def _ffn_kernel_resident(x_ref, w1_ref, b1_ref, w2_ref, b2_ref, o_ref):
    """Whole dff resident (kk == 1): out = relu(x @ W1 + b1) @ W2 + b2, no scratch."""
    h = jnp.dot(x_ref[...], w1_ref[...], preferred_element_type=jnp.float32)
    h = jnp.maximum(h + b1_ref[...], 0.0)
    # dropout (eval mode) -> identity
    out = jnp.dot(h.astype(w2_ref.dtype), w2_ref[...],
                  preferred_element_type=jnp.float32)
    o_ref[...] = (out + b2_ref[...]).astype(o_ref.dtype)


def _ffn_kernel_chunked(x_ref, w1_ref, b1_ref, w2_ref, b2_ref, o_ref, acc_ref):
    """dff split over grid axis 1 (kk > 1); resident f32 accumulator seeded with b2."""
    k = pl.program_id(1)

    @pl.when(k == 0)
    def _init():
        acc_ref[...] = jnp.broadcast_to(b2_ref[...], acc_ref.shape)

    h = jnp.dot(x_ref[...], w1_ref[...], preferred_element_type=jnp.float32)
    h = jnp.maximum(h + b1_ref[...], 0.0)
    # dropout (eval mode) -> identity
    acc_ref[...] += jnp.dot(h.astype(w2_ref.dtype), w2_ref[...],
                            preferred_element_type=jnp.float32)

    @pl.when(k == pl.num_programs(1) - 1)
    def _finalize():
        o_ref[...] = acc_ref[...].astype(o_ref.dtype)


# --------------------------- wrapper ---------------------------

def feed_forward_network(x, w1=None, b1=None, w2=None, b2=None, *,
                         compute_dtype=None, params=None, max_tk=None):
    """out = relu(x @ W1 + b1) @ W2 + b2 (Dropout is eval-mode identity).

    x: (..., d_model). Weights stored as (in, out) so the kernel computes x @ W + b,
    numerically identical to PyTorch's x @ W_t.T + b.
    """
    if params is None:
        assert w1 is not None and b1 is not None and w2 is not None and b2 is not None
        if compute_dtype is None:
            # bf16 MXU inputs with f32 accumulation: native MXU dtype on v5e/v6e/v7x,
            # halves weight HBM/VMEM.  Pass compute_dtype=jnp.float32 for exact f32.
            compute_dtype = jnp.bfloat16 if x.dtype == jnp.float32 else x.dtype
        params = prepare_ffn_params(w1, b1, w2, b2,
                                    compute_dtype=compute_dtype, max_tk=max_tk)

    cd = jnp.dtype(params.compute_dtype)
    item = cd.itemsize
    out_dtype = x.dtype
    out_item = jnp.dtype(out_dtype).itemsize

    d_model, d_model_p = params.d_model, params.d_model_p
    dff_p, tk, kk = params.dff_p, params.tk, params.kk
    assert x.shape[-1] == d_model

    orig_shape = x.shape
    x2d = x.reshape(-1, d_model)
    n = x2d.shape[0]

    # Balanced row tiling (minimizes padding for odd n); at least 2 row tiles on
    # 2-TensorCore parts so the "parallel" axis feeds both cores.
    n_tiles = max(1, _cdiv(n, _tm_target()))
    if _force_two_row_tiles() and n > 16 and n_tiles < 2:
        n_tiles = 2
    tm = max(16, _round_up(_cdiv(n, n_tiles), 16))
    n_p = _round_up(n, tm)
    grid_rows = n_p // tm

    # Pad + cast activations only when needed (aligned dims & matching dtype are a
    # pure pass-through; aligned dims with a dtype change are a plain cast).
    xp = _pad_cast_2d(x2d, (n_p, d_model_p), cd)

    est = _vmem_estimate(tm, d_model_p, tk, item, out_item, chunked=kk > 1)
    budget = _vmem_budget()
    vmem_limit = int(max(32 << 20, min(2 * est, budget)))
    if vmem_limit < est + (8 << 20):                 # always leave real headroom
        vmem_limit = int(min(est + (16 << 20), _vmem_capacity_bytes()))

    weight_bytes = params.w1.size * item + params.w2.size * item
    weight_passes = 1 if kk == 1 else grid_rows      # weights re-streamed per row tile
    cost = pl.CostEstimate(
        flops=int(4 * n_p * d_model_p * dff_p),      # two matmuls
        transcendentals=0,
        bytes_accessed=int(n_p * d_model_p * (item + out_item)
                           + weight_passes * weight_bytes
                           + params.b1.size * 4 + params.b2.size * 4),
    )

    if kk == 1:
        ffn = pl.pallas_call(
            _ffn_kernel_resident,
            out_shape=jax.ShapeDtypeStruct((n_p, d_model_p), out_dtype),
            grid_spec=pltpu.PrefetchScalarGridSpec(
                num_scalar_prefetch=0,
                grid=(grid_rows,),
                in_specs=[
                    pl.BlockSpec((tm, d_model_p), lambda i: (i, 0)),       # x row tile
                    pl.BlockSpec((d_model_p, dff_p), lambda i: (0, 0)),    # W1 resident
                    pl.BlockSpec((1, dff_p), lambda i: (0, 0)),            # b1 resident
                    pl.BlockSpec((dff_p, d_model_p), lambda i: (0, 0)),    # W2 resident
                    pl.BlockSpec((1, d_model_p), lambda i: (0, 0)),        # b2 resident
                ],
                out_specs=pl.BlockSpec((tm, d_model_p), lambda i: (i, 0)),
            ),
            compiler_params=pltpu.CompilerParams(
                dimension_semantics=("parallel",),
                vmem_limit_bytes=vmem_limit,
            ),
            cost_estimate=cost,
        )
    else:
        ffn = pl.pallas_call(
            _ffn_kernel_chunked,
            out_shape=jax.ShapeDtypeStruct((n_p, d_model_p), out_dtype),
            grid_spec=pltpu.PrefetchScalarGridSpec(
                num_scalar_prefetch=0,
                grid=(grid_rows, kk),
                in_specs=[
                    pl.BlockSpec((tm, d_model_p), lambda i, k: (i, 0)),    # x row tile
                    pl.BlockSpec((d_model_p, tk), lambda i, k: (0, k)),    # W1 chunk
                    pl.BlockSpec((1, tk), lambda i, k: (0, k)),            # b1 chunk
                    pl.BlockSpec((tk, d_model_p), lambda i, k: (k, 0)),    # W2 chunk
                    pl.BlockSpec((1, d_model_p), lambda i, k: (0, 0)),     # b2 (const)
                ],
                out_specs=pl.BlockSpec((tm, d_model_p), lambda i, k: (i, 0)),
                scratch_shapes=[pltpu.VMEM((tm, d_model_p), jnp.float32)],
            ),
            compiler_params=pltpu.CompilerParams(
                dimension_semantics=("parallel", "arbitrary"),
                vmem_limit_bytes=vmem_limit,
            ),
            cost_estimate=cost,
        )

    out = ffn(xp, params.w1, params.b1, params.w2, params.b2)
    if (n_p, d_model_p) != (n, d_model):
        out = out[:n, :d_model]
    return out.reshape(orig_shape)


if __name__ == "__main__":
    # Small deterministic setup consistent with the module's FFN:
    # batch=2, seq=8, d_model=32, dim_feedforward=64.
    batch, seq, d_model, dff = 2, 8, 32, 64
    key = jax.random.PRNGKey(0)
    kx, kw1, kb1, kw2, kb2 = jax.random.split(key, 5)

    # PyTorch nn.Linear(in, out) init: uniform(-1/sqrt(in), 1/sqrt(in)); weights are
    # stored (in_features, out_features) so the kernel computes x @ W + b.
    bound1 = 1.0 / jnp.sqrt(d_model)
    bound2 = 1.0 / jnp.sqrt(dff)
    w1 = jax.random.uniform(kw1, (d_model, dff), jnp.float32, -bound1, bound1)
    b1 = jax.random.uniform(kb1, (dff,), jnp.float32, -bound1, bound1)
    w2 = jax.random.uniform(kw2, (dff, d_model), jnp.float32, -bound2, bound2)
    b2 = jax.random.uniform(kb2, (d_model,), jnp.float32, -bound2, bound2)
    x = jax.random.normal(kx, (batch, seq, d_model), jnp.float32)

    # Pure-JAX reference (eval-mode dropout = identity).
    ref = jnp.maximum(x @ w1 + b1, 0.0) @ w2 + b2

    # 1) Explicit f32 MXU path (exact vs reference).
    out_f32 = jax.block_until_ready(
        feed_forward_network(x, w1, b1, w2, b2, compute_dtype=jnp.float32))
    assert out_f32.shape == x.shape
    assert jnp.allclose(out_f32, ref, atol=1e-5, rtol=1e-5), "f32 mismatch vs reference"

    # 2) Default path (bf16 MXU inputs, f32 accumulation) -> looser tolerance.
    out_def = jax.block_until_ready(feed_forward_network(x, w1, b1, w2, b2))
    assert out_def.shape == x.shape
    assert jnp.allclose(out_def, ref, atol=5e-2, rtol=5e-2), "bf16 mismatch vs reference"

    # 3) Aligned (no-padding) fast path + pre-prepared weights + forced dff chunking
    #    (kk > 1) so the chunked-accumulator kernel is exercised too.
    d_model2, dff2 = 128, 256
    k2 = jax.random.split(key, 6)
    bnd1 = 1.0 / jnp.sqrt(d_model2)
    bnd2 = 1.0 / jnp.sqrt(dff2)
    w1c = jax.random.uniform(k2[0], (d_model2, dff2), jnp.float32, -bnd1, bnd1)
    b1c = jax.random.uniform(k2[1], (dff2,), jnp.float32, -bnd1, bnd1)
    w2c = jax.random.uniform(k2[2], (dff2, d_model2), jnp.float32, -bnd2, bnd2)
    b2c = jax.random.uniform(k2[3], (d_model2,), jnp.float32, -bnd2, bnd2)
    x2 = jax.random.normal(k2[4], (batch, seq, d_model2), jnp.float32)
    ref2 = jnp.maximum(x2 @ w1c + b1c, 0.0) @ w2c + b2c
    pp = prepare_ffn_params(w1c, b1c, w2c, b2c, compute_dtype=jnp.float32, max_tk=128)
    assert pp.kk == 2, f"expected forced chunking, got kk={pp.kk}"
    out2 = jax.block_until_ready(feed_forward_network(x2, params=pp))
    assert out2.shape == x2.shape
    assert jnp.allclose(out2, ref2, atol=1e-4, rtol=1e-4), "chunked-dff mismatch"

    # 4) Odd row count (row-padding path), f32 exact.
    x3 = jax.random.normal(k2[5], (3, 7, d_model), jnp.float32)
    ref3 = jnp.maximum(x3 @ w1 + b1, 0.0) @ w2 + b2
    out3 = jax.block_until_ready(
        feed_forward_network(x3, w1, b1, w2, b2, compute_dtype=jnp.float32))
    assert out3.shape == x3.shape
    assert jnp.allclose(out3, ref3, atol=1e-5, rtol=1e-5), "row-padding mismatch"

    print("KERNEL_OK")
</pallas_src>

<mosaic_0001>
module attributes {stable_mosaic.version = 11 : i64} {
  func.func @_ffn_kernel_resident(%arg0: i32, %arg1: memref<16x128xf32, #tpu.memory_space<vmem>>, %arg2: memref<128x128xf32, #tpu.memory_space<vmem>>, %arg3: memref<1x128xf32, #tpu.memory_space<vmem>>, %arg4: memref<128x128xf32, #tpu.memory_space<vmem>>, %arg5: memref<1x128xf32, #tpu.memory_space<vmem>>, %arg6: memref<16x128xf32, #tpu.memory_space<vmem>>) attributes {dimension_semantics = [#tpu.dimension_semantics<parallel>], iteration_bounds = array<i64: 1>, scalar_prefetch = 0 : i64, scratch_operands = 0 : i64, tpu.core_type = #tpu.core_type<tc>, window_params = [{transform_indices = @transform_0, window_bounds = array<i64: 16, 128>}, {pipeline_mode = #tpu.pipeline_mode<synchronous>, transform_indices = @transform_1, window_bounds = array<i64: 128, 128>}, {pipeline_mode = #tpu.pipeline_mode<synchronous>, transform_indices = @transform_2, window_bounds = array<i64: 1, 128>}, {pipeline_mode = #tpu.pipeline_mode<synchronous>, transform_indices = @transform_3, window_bounds = array<i64: 128, 128>}, {pipeline_mode = #tpu.pipeline_mode<synchronous>, transform_indices = @transform_4, window_bounds = array<i64: 1, 128>}, {transform_indices = @transform_5, window_bounds = array<i64: 16, 128>}]} {
    %c0 = arith.constant 0 : index
    %c0_0 = arith.constant 0 : index
    %0 = vector.load %arg1[%c0, %c0_0] : memref<16x128xf32, #tpu.memory_space<vmem>>, vector<16x128xf32>
    %c0_1 = arith.constant 0 : index
    %c0_2 = arith.constant 0 : index
    %1 = vector.load %arg2[%c0_1, %c0_2] : memref<128x128xf32, #tpu.memory_space<vmem>>, vector<128x128xf32>
    %cst = arith.constant dense<0.000000e+00> : vector<16x128xf32>
    %2 = tpu.matmul %0, %1, %cst {dimension_numbers = #tpu.dot_dimension_numbers<[1], [0], [0], [1], [0, 0, 1, 1], [], []>} : vector<16x128xf32>, vector<128x128xf32>, vector<16x128xf32> -> vector<16x128xf32>
    %c0_3 = arith.constant 0 : index
    %c0_4 = arith.constant 0 : index
    %3 = vector.load %arg3[%c0_3, %c0_4] : memref<1x128xf32, #tpu.memory_space<vmem>>, vector<1x128xf32>
    %4 = vector.broadcast %3 : vector<1x128xf32> to vector<16x128xf32>
    %5 = arith.addf %2, %4 : vector<16x128xf32>
    %cst_5 = arith.constant 0.000000e+00 : f32
    %6 = vector.broadcast %cst_5 : f32 to vector<16x128xf32>
    %7 = arith.maximumf %5, %6 : vector<16x128xf32>
    %c0_6 = arith.constant 0 : index
    %c0_7 = arith.constant 0 : index
    %8 = vector.load %arg4[%c0_6, %c0_7] : memref<128x128xf32, #tpu.memory_space<vmem>>, vector<128x128xf32>
    %cst_8 = arith.constant dense<0.000000e+00> : vector<16x128xf32>
    %9 = tpu.matmul %7, %8, %cst_8 {dimension_numbers = #tpu.dot_dimension_numbers<[1], [0], [0], [1], [0, 0, 1, 1], [], []>} : vector<16x128xf32>, vector<128x128xf32>, vector<16x128xf32> -> vector<16x128xf32>
    %c0_9 = arith.constant 0 : index
    %c0_10 = arith.constant 0 : index
    %10 = vector.load %arg5[%c0_9, %c0_10] : memref<1x128xf32, #tpu.memory_space<vmem>>, vector<1x128xf32>
    %11 = vector.broadcast %10 : vector<1x128xf32> to vector<16x128xf32>
    %12 = arith.addf %9, %11 : vector<16x128xf32>
    %c0_11 = arith.constant 0 : index
    %c0_12 = arith.constant 0 : index
    %13 = vector.load %arg6[%c0_11, %c0_12] : memref<16x128xf32, #tpu.memory_space<vmem>>, vector<16x128xf32>
    tpu.vector_store %arg6[%c0_11, %c0_12], %12 {strides = array<i32>} : memref<16x128xf32, #tpu.memory_space<vmem>>, vector<16x128xf32>,
    return
  }
  func.func @transform_0(%arg0: i32) -> (i32, i32) {
    %c0_i32 = arith.constant 0 : i32
    %c0_i32_0 = arith.constant 0 : i32
    return %arg0, %c0_i32 : i32, i32
  }
  func.func @transform_1(%arg0: i32) -> (i32, i32) {
    %c0_i32 = arith.constant 0 : i32
    %c0_i32_0 = arith.constant 0 : i32
    %c0_i32_1 = arith.constant 0 : i32
    return %c0_i32, %c0_i32_0 : i32, i32
  }
  func.func @transform_2(%arg0: i32) -> (i32, i32) {
    %c0_i32 = arith.constant 0 : i32
    %c0_i32_0 = arith.constant 0 : i32
    %c0_i32_1 = arith.constant 0 : i32
    return %c0_i32, %c0_i32_0 : i32, i32
  }
  func.func @transform_3(%arg0: i32) -> (i32, i32) {
    %c0_i32 = arith.constant 0 : i32
    %c0_i32_0 = arith.constant 0 : i32
    %c0_i32_1 = arith.constant 0 : i32
    return %c0_i32, %c0_i32_0 : i32, i32
  }
  func.func @transform_4(%arg0: i32) -> (i32, i32) {
    %c0_i32 = arith.constant 0 : i32
    %c0_i32_0 = arith.constant 0 : i32
    %c0_i32_1 = arith.constant 0 : i32
    return %c0_i32, %c0_i32_0 : i32, i32
  }
  func.func @transform_5(%arg0: i32) -> (i32, i32) {
    %c0_i32 = arith.constant 0 : i32
    %c0_i32_0 = arith.constant 0 : i32
    return %arg0, %c0_i32 : i32, i32
  }
}

</mosaic_0001>

<llo_original>
// kernel: tpu_custom_call.1
$region0: #{tpu_custom_call.1}
  #allocation0 [shape = 'u32[]', space=smem, size = 0x4, offset = 0x4, fixed_abs, tag = 'smem constant byte address 0x4 - core index']
  #allocation1 [shape = 'u32[144,128]{1,0:T(1,128)}', space=vmem, size = 0x12000, scoped, tag = 'internal scratch']
  %s0 = inlined_call_operand.hbm [shape: f32[16,128], index: 0, kind: input, shape index: {}]
  %s1 = inlined_call_operand.hbm [shape: f32[128,128], index: 1, kind: input, shape index: {}]
  %s2 = inlined_call_operand.vmem [shape: f32[1,128], index: 2, kind: input, shape index: {}]
  %s3 = inlined_call_operand.hbm [shape: f32[128,128], index: 3, kind: input, shape index: {}]
  %s4 = inlined_call_operand.vmem [shape: f32[1,128], index: 4, kind: input, shape index: {}]
  %s5 = inlined_call_operand.hbm [shape: f32[16,128], index: 5, kind: output, shape index: {}]
  %s6 = sld [smem:[#allocation0]]
  $region42: #{tpu_custom_call.1} parent=0
    _
  %s8 = ssub.s32 1, %s6
  %s9 = scalar_select 0, %s8, %s6
  $region1: #{tpu_custom_call.1} parent=0
    #allocation2 [shape = 'u8[8192]{0}', space=vmem, size = 0x2000, scoped, tag = 'input window, operand 0, single buffered']
    #allocation3 [shape = 's32[1]{0}', space=sflag, size = 0x4, scoped, tag = 'scoped memory for tpu_custom_call.1']
    #allocation4 [shape = 's32[1]{0}', space=sflag, size = 0x4, scoped, tag = 'scoped memory for tpu_custom_call.1']
    #allocation5 [shape = 'u8[65536]{0}', space=vmem, size = 0x10000, scoped, tag = 'input window, operand 1, single buffered']
    #allocation6 [shape = 's32[1]{0}', space=sflag, size = 0x4, scoped, tag = 'scoped memory for tpu_custom_call.1']
    #allocation7 [shape = 'u8[65536]{0}', space=vmem, size = 0x10000, scoped, tag = 'input window, operand 3, single buffered']
    #allocation8 [shape = 'u8[8192]{0}', space=vmem, size = 0x2000, scoped, tag = 'output window, operand 0, single buffered']
    %10 = vsyncpa [#allocation3], 0
    %11 = vsyncpa [#allocation6], 0
    %12 = vsyncpa [#allocation4], 0
    // Predicated region
    $region2: #{tpu_custom_call.1} parent=1 // pred_check
      _
    $region3: #{tpu_custom_call.1} parent=1 // pred_check_branch
      %14 = sbr.rel (0) target = $region5
    $region4: #{tpu_custom_call.1} parent=1 // pred_region
      %s16 = ssub.s32 256, 256
      %17 = vsyncadd [#allocation3], %s16
      %s18 = sshll.u32 [#allocation2], 4
      %s19 = int_to_ptr.vmem [resolvable:$true] %s18
      %24 = dma.hbm_to_vmem [thread:$0]  %s0, 256, %s19, [#allocation3], 128, 128, 8
    $region5: #{tpu_custom_call.1} parent=1 // pred_fallthru
      _
    // Predicated region
    $region6: #{tpu_custom_call.1} parent=1 // pred_check
      _
    $region7: #{tpu_custom_call.1} parent=1 // pred_check_branch
      %26 = sbr.rel (0) target = $region9
    $region8: #{tpu_custom_call.1} parent=1 // pred_region
      %s28 = ssub.s32 2048, 2048
      %29 = vsyncadd [#allocation6], %s28
      %s30 = sshll.u32 [#allocation5], 4
      %s31 = int_to_ptr.vmem [resolvable:$true] %s30
      %36 = dma.hbm_to_vmem [thread:$0]  %s1, 2048, %s31, [#allocation6], 128, 128, 8
    $region9: #{tpu_custom_call.1} parent=1 // pred_fallthru
      _
    // Predicated region
    $region10: #{tpu_custom_call.1} parent=1 // pred_check
      _
    $region11: #{tpu_custom_call.1} parent=1 // pred_check_branch
      %38 = sbr.rel (0) target = $region13
    $region12: #{tpu_custom_call.1} parent=1 // pred_region
      _
    $region13: #{tpu_custom_call.1} parent=1 // pred_fallthru
      _
    // Predicated region
    $region14: #{tpu_custom_call.1} parent=1 // pred_check
      _
    $region15: #{tpu_custom_call.1} parent=1 // pred_check_branch
      %40 = sbr.rel (0) target = $region17
    $region16: #{tpu_custom_call.1} parent=1 // pred_region
      %s42 = ssub.s32 2048, 2048
      %43 = vsyncadd [#allocation6], %s42
      %s44 = sshll.u32 [#allocation7], 4
      %s45 = int_to_ptr.vmem [resolvable:$true] %s44
      %50 = dma.hbm_to_vmem [thread:$0]  %s3, 2048, %s45, [#allocation6], 128, 128, 8
    $region17: #{tpu_custom_call.1} parent=1 // pred_fallthru
      _
    // Predicated region
    $region18: #{tpu_custom_call.1} parent=1 // pred_check
      _
    $region19: #{tpu_custom_call.1} parent=1 // pred_check_branch
      %52 = sbr.rel (0) target = $region21
    $region20: #{tpu_custom_call.1} parent=1 // pred_region
      _
    $region21: #{tpu_custom_call.1} parent=1 // pred_fallthru
      _
    // Predicated region
    $region22: #{tpu_custom_call.1} parent=1 // pred_check
      _
    $region23: #{tpu_custom_call.1} parent=1 // pred_check_branch
      %54 = sbr.rel (0) target = $region25
    $region24: #{tpu_custom_call.1} parent=1 // pred_region
      %55 = dma.done [#allocation3], 256
    $region25: #{tpu_custom_call.1} parent=1 // pred_fallthru
      _
    // Predicated region
    $region26: #{tpu_custom_call.1} parent=1 // pred_check
      _
    $region27: #{tpu_custom_call.1} parent=1 // pred_check_branch
      %57 = sbr.rel (0) target = $region29
    $region28: #{tpu_custom_call.1} parent=1 // pred_region
      %58 = dma.done [#allocation6], 2048
    $region29: #{tpu_custom_call.1} parent=1 // pred_fallthru
      _
    // Predicated region
    $region30: #{tpu_custom_call.1} parent=1 // pred_check
      _
    $region31: #{tpu_custom_call.1} parent=1 // pred_check_branch
      %60 = sbr.rel (0) target = $region33
    $region32: #{tpu_custom_call.1} parent=1 // pred_region
      %61 = dma.done [#allocation6], 2048
    $region33: #{tpu_custom_call.1} parent=1 // pred_fallthru
      _
    %v62 = vld [vmem:[#allocation2] sm:$0xff]
    %v63 = vld [vmem:[#allocation2 + $0x8] sm:$0xff]
    %v64 = vld [vmem:[#allocation5] sm:$0xff]
    %v65 = vld [vmem:[#allocation5 + $0x8] sm:$0xff]
    %v66 = vld [vmem:[#allocation5 + $0x10] sm:$0xff]
    %v67 = vld [vmem:[#allocation5 + $0x18] sm:$0xff]
    %v68 = vld [vmem:[#allocation5 + $0x20] sm:$0xff]
    %v69 = vld [vmem:[#allocation5 + $0x28] sm:$0xff]
    %v70 = vld [vmem:[#allocation5 + $0x30] sm:$0xff]
    %v71 = vld [vmem:[#allocation5 + $0x38] sm:$0xff]
    %v72 = vld [vmem:[#allocation5 + $0x40] sm:$0xff]
    %v73 = vld [vmem:[#allocation5 + $0x48] sm:$0xff]
    %v74 = vld [vmem:[#allocation5 + $0x50] sm:$0xff]
    %v75 = vld [vmem:[#allocation5 + $0x58] sm:$0xff]
    %v76 = vld [vmem:[#allocation5 + $0x60] sm:$0xff]
    %v77 = vld [vmem:[#allocation5 + $0x68] sm:$0xff]
    %v78 = vld [vmem:[#allocation5 + $0x70] sm:$0xff]
    %v79 = vld [vmem:[#allocation5 + $0x78] sm:$0xff]
    %v80 = vld [vmem:[%s2] sm:$0x1]
    %v82 = vlaneseq
    %v83 = vshrl.u32 %v82, 7
    %v84 = vsub.s32 0, %v83
    %v85 = vrot.slane %v80, %v84
    %87 = vmatprep.subr.mxu0 0.0
    %88 = vmatpush1.msra.mxu0 %v64
    %89 = vmatprep.subr.mxu0 0.0
    %90 = vmatpush1.msra.mxu0 %v65
    %91 = vmatprep.subr.mxu0 0.0
    %92 = vmatpush1.msra.mxu0 %v66
    %93 = vmatprep.subr.mxu0 0.0
    %94 = vmatpush1.msra.mxu0 %v67
    %95 = vmatprep.subr.mxu0 0.0
    %96 = vmatpush1.msra.mxu0 %v68
    %97 = vmatprep.subr.mxu0 0.0
    %98 = vmatpush1.msra.mxu0 %v69
    %99 = vmatprep.subr.mxu0 0.0
    %100 = vmatpush1.msra.mxu0 %v70
    %101 = vmatprep.subr.mxu0 0.0
    %102 = vmatpush1.msra.mxu0 %v71
    %103 = vmatprep.subr.mxu0 0.0
    %104 = vmatpush1.msra.mxu0 %v72
    %105 = vmatprep.subr.mxu0 0.0
    %106 = vmatpush1.msra.mxu0 %v73
    %107 = vmatprep.subr.mxu0 0.0
    %108 = vmatpush1.msra.mxu0 %v74
    %109 = vmatprep.subr.mxu0 0.0
    %110 = vmatpush1.msra.mxu0 %v75
    %111 = vmatprep.subr.mxu0 0.0
    %112 = vmatpush1.msra.mxu0 %v76
    %113 = vmatprep.subr.mxu0 0.0
    %114 = vmatpush1.msra.mxu0 %v77
    %115 = vmatprep.subr.mxu0 0.0
    %116 = vmatpush1.msra.mxu0 %v78
    %117 = vmatprep.subr.mxu0 0.0
    %118 = vmatpush1.msra.mxu0 %v79
    %119 = vmatprep.subr.mxu0 0.0
    %120 = vmatpush1.msra.mxu0 0.0
    %121 = vmatprep.subr.mxu0 0.0
    %122 = vmatpush1.msra.mxu0 0.0
    %123 = vmatprep.subr.mxu0 0.0
    %124 = vmatpush1.msra.mxu0 0.0
    %125 = vmatprep.subr.mxu0 0.0
    %126 = vmatpush1.msra.mxu0 0.0
    %127 = vmatprep.subr.mxu0 0.0
    %128 = vmatpush1.msra.mxu0 0.0
    %129 = vmatprep.subr.mxu0 0.0
    %130 = vmatpush1.msra.mxu0 0.0
    %131 = vmatprep.subr.mxu0 0.0
    %132 = vmatpush1.msra.mxu0 0.0
    %133 = vmatprep.subr.mxu0 0.0
    %134 = vmatpush1.msra.mxu0 0.0
    %135 = vmatprep.subr.mxu0 0.0
    %136 = vmatpush1.msra.mxu0 0.0
    %137 = vmatprep.subr.mxu0 0.0
    %138 = vmatpush1.msra.mxu0 0.0
    %139 = vmatprep.subr.mxu0 0.0
    %140 = vmatpush1.msra.mxu0 0.0
    %141 = vmatprep.subr.mxu0 0.0
    %142 = vmatpush1.msra.mxu0 0.0
    %143 = vmatprep.subr.mxu0 0.0
    %144 = vmatpush1.msra.mxu0 0.0
    %145 = vmatprep.subr.mxu0 0.0
    %146 = vmatpush1.msra.mxu0 0.0
    %147 = vmatprep.subr.mxu0 0.0
    %148 = vmatpush1.msra.mxu0 0.0
    %149 = vmatprep.subr.mxu0 0.0
    %150 = vmatpush1.msra.mxu0 0.0
    %151 = vmatprep.mubr.f32.mxu0 0.0
    %152 = vmatmul.mubr.f32.gmra.mrb[0].mxu0 %v62
    %v153 = vpop.f32.mrb[0].mxu0
    %v154 = vadd.f32 %v85, %v153
    %v155 = vpop.f32.mrb[0].mxu0
    %156 = vmatprep.mubr.f32.mxu0 0.0
    %157 = vmatmul.mubr.f32.gmra.mrb[0].mxu0 %v63
    %v158 = vpop.f32.mrb[0].mxu0
    %v159 = vadd.f32 %v85, %v158
    %v160 = vpop.f32.mrb[0].mxu0
    %161 = vdwg.mxu0
    %v162 = vmax.f32 %v154, 0.0
    %v163 = vmax.f32 %v159, 0.0
    %v164 = vld [vmem:[#allocation7] sm:$0xff]
    %v165 = vld [vmem:[#allocation7 + $0x8] sm:$0xff]
    %v166 = vld [vmem:[#allocation7 + $0x10] sm:$0xff]
    %v167 = vld [vmem:[#allocation7 + $0x18] sm:$0xff]
    %v168 = vld [vmem:[#allocation7 + $0x20] sm:$0xff]
    %v169 = vld [vmem:[#allocation7 + $0x28] sm:$0xff]
    %v170 = vld [vmem:[#allocation7 + $0x30] sm:$0xff]
    %v171 = vld [vmem:[#allocation7 + $0x38] sm:$0xff]
    %v172 = vld [vmem:[#allocation7 + $0x40] sm:$0xff]
    %v173 = vld [vmem:[#allocation7 + $0x48] sm:$0xff]
    %v174 = vld [vmem:[#allocation7 + $0x50] sm:$0xff]
    %v175 = vld [vmem:[#allocation7 + $0x58] sm:$0xff]
    %v176 = vld [vmem:[#allocation7 + $0x60] sm:$0xff]
    %v177 = vld [vmem:[#allocation7 + $0x68] sm:$0xff]
    %v178 = vld [vmem:[#allocation7 + $0x70] sm:$0xff]
    %v179 = vld [vmem:[#allocation7 + $0x78] sm:$0xff]
    %v180 = vld [vmem:[%s4] sm:$0x1]
    %v182 = vlaneseq
    %v183 = vshrl.u32 %v182, 7
    %v184 = vsub.s32 0, %v183
    %v185 = vrot.slane %v180, %v184
    %187 = vmatprep.subr.mxu0 0.0
    %188 = vmatpush1.msra.mxu0 %v164
    %189 = vmatprep.subr.mxu0 0.0
    %190 = vmatpush1.msra.mxu0 %v165
    %191 = vmatprep.subr.mxu0 0.0
    %192 = vmatpush1.msra.mxu0 %v166
    %193 = vmatprep.subr.mxu0 0.0
    %194 = vmatpush1.msra.mxu0 %v167
    %195 = vmatprep.subr.mxu0 0.0
    %196 = vmatpush1.msra.mxu0 %v168
    %197 = vmatprep.subr.mxu0 0.0
    %198 = vmatpush1.msra.mxu0 %v169
    %199 = vmatprep.subr.mxu0 0.0
    %200 = vmatpush1.msra.mxu0 %v170
    %201 = vmatprep.subr.mxu0 0.0
    %202 = vmatpush1.msra.mxu0 %v171
    %203 = vmatprep.subr.mxu0 0.0
    %204 = vmatpush1.msra.mxu0 %v172
    %205 = vmatprep.subr.mxu0 0.0
    %206 = vmatpush1.msra.mxu0 %v173
    %207 = vmatprep.subr.mxu0 0.0
    %208 = vmatpush1.msra.mxu0 %v174
    %209 = vmatprep.subr.mxu0 0.0
    %210 = vmatpush1.msra.mxu0 %v175
    %211 = vmatprep.subr.mxu0 0.0
    %212 = vmatpush1.msra.mxu0 %v176
    %213 = vmatprep.subr.mxu0 0.0
    %214 = vmatpush1.msra.mxu0 %v177
    %215 = vmatprep.subr.mxu0 0.0
    %216 = vmatpush1.msra.mxu0 %v178
    %217 = vmatprep.subr.mxu0 0.0
    %218 = vmatpush1.msra.mxu0 %v179
    %219 = vmatprep.subr.mxu0 0.0
    %220 = vmatpush1.msra.mxu0 0.0
    %221 = vmatprep.subr.mxu0 0.0
    %222 = vmatpush1.msra.mxu0 0.0
    %223 = vmatprep.subr.mxu0 0.0
    %224 = vmatpush1.msra.mxu0 0.0
    %225 = vmatprep.subr.mxu0 0.0
    %226 = vmatpush1.msra.mxu0 0.0
    %227 = vmatprep.subr.mxu0 0.0
    %228 = vmatpush1.msra.mxu0 0.0
    %229 = vmatprep.subr.mxu0 0.0
    %230 = vmatpush1.msra.mxu0 0.0
    %231 = vmatprep.subr.mxu0 0.0
    %232 = vmatpush1.msra.mxu0 0.0
    %233 = vmatprep.subr.mxu0 0.0
    %234 = vmatpush1.msra.mxu0 0.0
    %235 = vmatprep.subr.mxu0 0.0
    %236 = vmatpush1.msra.mxu0 0.0
    %237 = vmatprep.subr.mxu0 0.0
    %238 = vmatpush1.msra.mxu0 0.0
    %239 = vmatprep.subr.mxu0 0.0
    %240 = vmatpush1.msra.mxu0 0.0
    %241 = vmatprep.subr.mxu0 0.0
    %242 = vmatpush1.msra.mxu0 0.0
    %243 = vmatprep.subr.mxu0 0.0
    %244 = vmatpush1.msra.mxu0 0.0
    %245 = vmatprep.subr.mxu0 0.0
    %246 = vmatpush1.msra.mxu0 0.0
    %247 = vmatprep.subr.mxu0 0.0
    %248 = vmatpush1.msra.mxu0 0.0
    %249 = vmatprep.subr.mxu0 0.0
    %250 = vmatpush1.msra.mxu0 0.0
    %251 = vmatprep.mubr.f32.mxu0 0.0
    %252 = vmatmul.mubr.f32.gmra.mrb[0].mxu0 %v162
    %v253 = vpop.f32.mrb[0].mxu0
    %v254 = vadd.f32 %v185, %v253
    %v255 = vpop.f32.mrb[0].mxu0
    %256 = vmatprep.mubr.f32.mxu0 0.0
    %257 = vmatmul.mubr.f32.gmra.mrb[0].mxu0 %v163
    %v258 = vpop.f32.mrb[0].mxu0
    %v259 = vadd.f32 %v185, %v258
    %v260 = vpop.f32.mrb[0].mxu0
    %261 = vdwg.mxu0
    %262 = vst [vmem:[#allocation8] sm:$0xff] %v254
    %263 = vst [vmem:[#allocation8 + $0x8] sm:$0xff] %v259
    // Predicated region
    $region34: #{tpu_custom_call.1} parent=1 // pred_check
      _
    $region35: #{tpu_custom_call.1} parent=1 // pred_check_branch
      %265 = sbr.rel (0) target = $region37
    $region36: #{tpu_custom_call.1} parent=1 // pred_region
      %s267 = ssub.s32 256, 256
      %268 = vsyncadd [#allocation4], %s267
      %s269 = sshll.u32 [#allocation8], 4
      %s270 = int_to_ptr.vmem [resolvable:$true] %s269
      %275 = dma.vmem_to_hbm [thread:$0]  %s270, 256, %s5, [#allocation4], 128, 128, 8
    $region37: #{tpu_custom_call.1} parent=1 // pred_fallthru
      _
    // Predicated region
    $region38: #{tpu_custom_call.1} parent=1 // pred_check
      _
    $region39: #{tpu_custom_call.1} parent=1 // pred_check_branch
      %277 = sbr.rel (0) target = $region41
    $region40: #{tpu_custom_call.1} parent=1 // pred_region
      %278 = dma.done [#allocation4], 256
    $region41: #{tpu_custom_call.1} parent=1 // pred_fallthru
      _
    %279 = vsyncpa [#allocation3], 1
    %280 = vsyncpa [#allocation6], 1
    %281 = vsyncpa [#allocation4], 1

</llo_original>
